<compile_context>
chip_gen: v7x
topology: tpu7x:2x2x1
jax: 0.10.0
libtpu: 0.0.40
codegen_flags: <defaults>
</compile_context>

<pallas_src>
import functools

import jax
import jax.numpy as jnp
from jax import lax
from jax.experimental import pallas as pl
from jax.experimental.pallas import tpu as pltpu

SCALE = 1.0
MARGIN = 0.25

_LANE = 128


def _round_up(x, m):
    return (x + m - 1) // m * m


def _pick_tile(n, d, feat_bytes, max_tile, vmem_budget):
    """Largest lane-aligned tile whose per-step VMEM footprint fits the budget."""
    max_tile = max(_LANE, int(max_tile))
    n8 = _round_up(n, 8)
    tile = _LANE
    for cand in (512, 384, 256, 128):
        if cand > max_tile:
            continue
        feat_cost = 2 * 2 * cand * d * feat_bytes      # frow+fcol, double-buffered
        elem_cost = 8 * cand * cand * 4                # (tile,tile) f32 temporaries
        if feat_cost + elem_cost <= vmem_budget:
            tile = cand
            break
    if n8 <= tile:
        tile = n8                                      # single block covers all rows
    return tile


def _circle_loss_kernel(bi_ref, bj_ref, frow_ref, fcol_ref, crow_ref, ccol_ref,
                        out_ref, *, n_valid, n_pad, tile, nblocks, scale, margin):
    t = pl.program_id(0)
    bi = bi_ref[t]
    bj = bj_ref[t]

    needs_pad = (n_valid != n_pad)        # static (trace-time) flag
    margin_p = 1.0 - margin

    # rows @ cols.T on the MXU (contract dim 1 with dim 1, no explicit transpose).
    sim = lax.dot_general(
        frow_ref[...], fcol_ref[...],
        dimension_numbers=(((1,), (1,)), ((), ())),
        preferred_element_type=jnp.float32)                      # (tile, tile) f32

    # Same-class mask from int class ids (== labels @ labels.T for one-hot labels).
    same = crow_ref[...] == ccol_ref[...]                        # (tile,1)==(1,tile)

    alpha_p = jnp.maximum((1.0 + margin) - sim, 0.0)             # relu(-s + 1 + m)
    alpha_n = jnp.maximum(sim + margin, 0.0)                     # relu(s + m)
    # pos / neg pairs are mutually exclusive -> a single exp per element.
    expo = jnp.where(same,
                     -alpha_p * (sim - margin_p),
                     alpha_n * (sim - margin))
    if scale != 1.0:                                             # folded when scale==1
        expo = scale * expo
    e = jnp.exp(expo)

    def emit(valid):
        e_valid = e if valid is None else jnp.where(valid, e, 0.0)
        sum_pos = jnp.sum(jnp.where(same, e_valid, 0.0))
        sum_all = jnp.sum(e_valid)
        out_ref[0, 0] = sum_pos
        out_ref[0, 1] = sum_all - sum_pos                        # fused neg reduction

    def tri_pad_mask():
        row = bi * tile + lax.broadcasted_iota(jnp.int32, (tile, tile), 0)
        col = bj * tile + lax.broadcasted_iota(jnp.int32, (tile, tile), 1)
        valid = col > row                                        # strict upper triangle
        if needs_pad:
            valid = jnp.logical_and(
                valid, jnp.logical_and(row < n_valid, col < n_valid))
        return valid

    if nblocks == 1:
        # Single block: always the diagonal (+ padding) case.
        emit(tri_pad_mask())
    else:
        # Interior blocks (bj > bi and no padding) need no mask at all; because the
        # grid is triangular, bi != bj already implies all col > row in the block.
        if needs_pad:
            is_interior = jnp.logical_and(bi != bj, bj != nblocks - 1)
        else:
            is_interior = bi != bj

        @pl.when(is_interior)
        def _fast():
            emit(None)

        @pl.when(jnp.logical_not(is_interior))
        def _masked():
            emit(tri_pad_mask())


def circle_loss(feats, labels, *, scale=SCALE, margin=MARGIN, max_tile=512,
                use_bf16=True, vmem_budget=24 * 1024 * 1024):
    """feats: (N, D) float, labels: (N, C) one-hot float. Returns scalar f32 loss."""
    N, D = feats.shape
    assert labels.shape[0] == N

    # TODO(synk): the int class-id compare assumes strictly one-hot labels; soft /
    # multi-hot labels would need the full labels @ labels.T mask instead.
    cls = jnp.argmax(labels, axis=-1).astype(jnp.int32)

    # F.normalize hoisted out of the tiled loop: done exactly once here (f32).
    x = feats.astype(jnp.float32)
    norm = jnp.sqrt(jnp.sum(x * x, axis=-1, keepdims=True))
    fn = x / jnp.maximum(norm, 1e-12)

    # bf16 feature tiles (cast ONCE here, not per grid step): halves DMA and uses
    # the bf16-native MXU path; accumulation stays f32 in the kernel.
    feat_dtype = jnp.bfloat16 if use_bf16 else jnp.float32
    fn = fn.astype(feat_dtype)

    tile = _pick_tile(N, D, jnp.dtype(feat_dtype).itemsize, max_tile, vmem_budget)
    n_pad = _round_up(N, tile)
    if n_pad != N:
        fn = jnp.pad(fn, ((0, n_pad - N), (0, 0)))
        cls = jnp.pad(cls, (0, n_pad - N), constant_values=-1)
    nblocks = n_pad // tile

    cls_row = cls.reshape(n_pad, 1)
    cls_col = cls.reshape(1, n_pad)

    # Triangular grid: enumerate only block pairs with bj >= bi (scalar prefetch).
    pairs = [(i, j) for i in range(nblocks) for j in range(i, nblocks)]
    bi_arr = jnp.asarray([p[0] for p in pairs], dtype=jnp.int32)
    bj_arr = jnp.asarray([p[1] for p in pairs], dtype=jnp.int32)
    nsteps = len(pairs)

    kernel = functools.partial(
        _circle_loss_kernel,
        n_valid=N, n_pad=n_pad, tile=tile, nblocks=nblocks,
        scale=float(scale), margin=float(margin))

    partials = pl.pallas_call(
        kernel,
        out_shape=jax.ShapeDtypeStruct((nsteps, 2), jnp.float32),
        grid_spec=pltpu.PrefetchScalarGridSpec(
            num_scalar_prefetch=2,
            grid=(nsteps,),
            in_specs=[
                pl.BlockSpec((tile, D), lambda t, bi, bj: (bi[t], 0)),  # row feats
                pl.BlockSpec((tile, D), lambda t, bi, bj: (bj[t], 0)),  # col feats
                pl.BlockSpec((tile, 1), lambda t, bi, bj: (bi[t], 0)),  # row class ids
                pl.BlockSpec((1, tile), lambda t, bi, bj: (0, bj[t])),  # col class ids
            ],
            out_specs=pl.BlockSpec((1, 2), lambda t, bi, bj: (t, 0),
                                   memory_space=pltpu.SMEM),
        ),
        compiler_params=pltpu.CompilerParams(
            # One partial per step, no cross-step accumulation -> the whole grid is
            # parallel-safe (v7x megacore splits it across both TensorCores).
            dimension_semantics=("parallel",),
            vmem_limit_bytes=40 * 1024 * 1024),
    )(bi_arr, bj_arr, fn, fn, cls_row, cls_col)

    # Tree-sum the per-block partials in the wrapper (numerically safer than one
    # sequential scalar accumulator), then the trivial scalar epilogue.
    loss_p = jnp.sum(partials[:, 0])
    loss_n = jnp.sum(partials[:, 1])
    return jnp.log(1.0 + loss_p * loss_n)


def circle_loss_ref(feats, labels, scale=SCALE, margin=MARGIN):
    """Pure-JAX reference mirroring the PyTorch forward (similarity='cos')."""
    norm = jnp.maximum(jnp.linalg.norm(feats, axis=-1, keepdims=True), 1e-12)
    fn = feats / norm
    sim = fn @ fn.T
    mask = labels @ labels.T
    n = sim.shape[0]
    triu = jnp.triu(jnp.ones((n, n), bool), k=1)
    pos_ind = triu & (mask == 1.0)
    neg_ind = triu & (jnp.abs(mask - 1.0) == 1.0)
    alpha_p = jax.nn.relu(-sim + 1.0 + margin)
    alpha_n = jax.nn.relu(sim + margin)
    term_p = jnp.exp(-scale * alpha_p * (sim - (1.0 - margin)))
    term_n = jnp.exp(scale * alpha_n * (sim - margin))
    loss_p = jnp.sum(jnp.where(pos_ind, term_p, 0.0))
    loss_n = jnp.sum(jnp.where(neg_ind, term_n, 0.0))
    return jnp.log(1.0 + loss_p * loss_n)


if __name__ == "__main__":
    key = jax.random.PRNGKey(0)
    k1, k2, k3, k4 = jax.random.split(key, 4)

    # --- Test 1: tiny single-block shape matching the module usage -------------
    N, D, C = 8, 32, 4
    feats = jax.random.normal(k1, (N, D), dtype=jnp.float32)
    classes = jax.random.randint(k2, (N,), 0, C)
    labels = jax.nn.one_hot(classes, C, dtype=jnp.float32)
    ref = circle_loss_ref(feats, labels)

    loss = circle_loss(feats, labels)                       # default bf16 features
    jax.block_until_ready(loss)
    assert jnp.allclose(loss, ref, rtol=2e-2, atol=1e-3), (loss, ref)

    loss_f32 = circle_loss(feats, labels, use_bf16=False)   # exact-precision path
    jax.block_until_ready(loss_f32)
    assert jnp.allclose(loss_f32, ref, rtol=1e-5, atol=1e-5), (loss_f32, ref)

    # --- Test 2: multi-block shape exercising the triangular grid, the interior
    # fast path, diagonal blocks, and the padded-edge masking (max_tile=128 so
    # the small problem still produces a 3x3 block triangle = 6 grid steps). ----
    N2, D2, C2 = 300, 32, 4
    feats2 = jax.random.normal(k3, (N2, D2), dtype=jnp.float32)
    classes2 = jax.random.randint(k4, (N2,), 0, C2)
    labels2 = jax.nn.one_hot(classes2, C2, dtype=jnp.float32)
    ref2 = circle_loss_ref(feats2, labels2)

    loss2 = circle_loss(feats2, labels2, max_tile=128)
    jax.block_until_ready(loss2)
    assert jnp.allclose(loss2, ref2, rtol=2e-2, atol=1e-3), (loss2, ref2)

    loss2_f32 = circle_loss(feats2, labels2, max_tile=128, use_bf16=False)
    jax.block_until_ready(loss2_f32)
    assert jnp.allclose(loss2_f32, ref2, rtol=1e-4, atol=1e-4), (loss2_f32, ref2)

    print("KERNEL_OK")
</pallas_src>

<mosaic_0001>
module attributes {stable_mosaic.version = 11 : i64} {
  func.func @_circle_loss_kernel(%arg0: i32, %arg1: memref<1xi32, #tpu.memory_space<smem>>, %arg2: memref<1xi32, #tpu.memory_space<smem>>, %arg3: memref<8x32xbf16, #tpu.memory_space<vmem>>, %arg4: memref<8x32xbf16, #tpu.memory_space<vmem>>, %arg5: memref<8x1xi32, #tpu.memory_space<vmem>>, %arg6: memref<1x8xi32, #tpu.memory_space<vmem>>, %arg7: memref<1x2xf32, #tpu.memory_space<smem>>) attributes {dimension_semantics = [#tpu.dimension_semantics<parallel>], iteration_bounds = array<i64: 1>, scalar_prefetch = 2 : i64, scratch_operands = 0 : i64, tpu.core_type = #tpu.core_type<tc>, window_params = [{transform_indices = @transform_0, window_bounds = array<i64: 8, 32>}, {transform_indices = @transform_1, window_bounds = array<i64: 8, 32>}, {transform_indices = @transform_2, window_bounds = array<i64: 8, 1>}, {transform_indices = @transform_3, window_bounds = array<i64: 1, 8>}, {transform_indices = @transform_4, window_bounds = array<i64: 1, 2>}]} {
    %0 = arith.index_cast %arg0 : i32 to index
    %1 = memref.load %arg1[%0] : memref<1xi32, #tpu.memory_space<smem>>
    %2 = arith.index_cast %arg0 : i32 to index
    %3 = memref.load %arg2[%2] : memref<1xi32, #tpu.memory_space<smem>>
    %c0 = arith.constant 0 : index
    %c0_0 = arith.constant 0 : index
    %4 = vector.load %arg3[%c0, %c0_0] : memref<8x32xbf16, #tpu.memory_space<vmem>>, vector<8x32xbf16>
    %c0_1 = arith.constant 0 : index
    %c0_2 = arith.constant 0 : index
    %5 = vector.load %arg4[%c0_1, %c0_2] : memref<8x32xbf16, #tpu.memory_space<vmem>>, vector<8x32xbf16>
    %cst = arith.constant dense<0.000000e+00> : vector<8x8xf32>
    %6 = tpu.matmul %4, %5, %cst {dimension_numbers = #tpu.dot_dimension_numbers<[1], [1], [0], [0], [0, 0, 1, 0], [], []>} : vector<8x32xbf16>, vector<8x32xbf16>, vector<8x8xf32> -> vector<8x8xf32>
    %c0_3 = arith.constant 0 : index
    %c0_4 = arith.constant 0 : index
    %7 = vector.load %arg5[%c0_3, %c0_4] : memref<8x1xi32, #tpu.memory_space<vmem>>, vector<8x1xi32>
    %c0_5 = arith.constant 0 : index
    %c0_6 = arith.constant 0 : index
    %8 = vector.load %arg6[%c0_5, %c0_6] : memref<1x8xi32, #tpu.memory_space<vmem>>, vector<1x8xi32>
    %9 = vector.broadcast %7 : vector<8x1xi32> to vector<8x8xi32>
    %10 = vector.broadcast %8 : vector<1x8xi32> to vector<8x8xi32>
    %11 = arith.cmpi eq, %9, %10 : vector<8x8xi32>
    %cst_7 = arith.constant 1.250000e+00 : f32
    %12 = vector.broadcast %cst_7 : f32 to vector<8x8xf32>
    %13 = arith.subf %12, %6 : vector<8x8xf32>
    %cst_8 = arith.constant 0.000000e+00 : f32
    %14 = vector.broadcast %cst_8 : f32 to vector<8x8xf32>
    %15 = arith.maximumf %13, %14 : vector<8x8xf32>
    %cst_9 = arith.constant 2.500000e-01 : f32
    %16 = vector.broadcast %cst_9 : f32 to vector<8x8xf32>
    %17 = arith.addf %6, %16 : vector<8x8xf32>
    %cst_10 = arith.constant 0.000000e+00 : f32
    %18 = vector.broadcast %cst_10 : f32 to vector<8x8xf32>
    %19 = arith.maximumf %17, %18 : vector<8x8xf32>
    %cst_11 = arith.constant 0.000000e+00 : f32
    %20 = vector.broadcast %cst_11 : f32 to vector<8x8xf32>
    %21 = arith.subf %20, %15 : vector<8x8xf32>
    %cst_12 = arith.constant 7.500000e-01 : f32
    %22 = vector.broadcast %cst_12 : f32 to vector<8x8xf32>
    %23 = arith.subf %6, %22 : vector<8x8xf32>
    %24 = arith.mulf %21, %23 : vector<8x8xf32>
    %cst_13 = arith.constant 2.500000e-01 : f32
    %25 = vector.broadcast %cst_13 : f32 to vector<8x8xf32>
    %26 = arith.subf %6, %25 : vector<8x8xf32>
    %27 = arith.mulf %19, %26 : vector<8x8xf32>
    %28 = arith.select %11, %24, %27 : vector<8x8xi1>, vector<8x8xf32>
    %29 = math.exp %28 : vector<8x8xf32>
    %c8_i32 = arith.constant 8 : i32
    %30 = arith.muli %1, %c8_i32 : i32
    %31 = tpu.iota {dimensions = array<i32: 0>} : vector<8x8xi32>
    %32 = vector.broadcast %30 : i32 to vector<8x8xi32>
    %33 = arith.addi %32, %31 : vector<8x8xi32>
    %c8_i32_14 = arith.constant 8 : i32
    %34 = arith.muli %3, %c8_i32_14 : i32
    %35 = tpu.iota {dimensions = array<i32: 1>} : vector<8x8xi32>
    %36 = vector.broadcast %34 : i32 to vector<8x8xi32>
    %37 = arith.addi %36, %35 : vector<8x8xi32>
    %38 = arith.cmpi sgt, %37, %33 : vector<8x8xi32>
    %cst_15 = arith.constant 0.000000e+00 : f32
    %39 = vector.broadcast %cst_15 : f32 to vector<8x8xf32>
    %40 = arith.select %38, %29, %39 : vector<8x8xi1>, vector<8x8xf32>
    %cst_16 = arith.constant 0.000000e+00 : f32
    %41 = vector.broadcast %cst_16 : f32 to vector<8x8xf32>
    %42 = arith.select %11, %40, %41 : vector<8x8xi1>, vector<8x8xf32>
    %43 = vector.shape_cast %42 : vector<8x8xf32> to vector<1x8x8xf32>
    %cst_17 = arith.constant dense<0.000000e+00> : vector<1xf32>
    %44 = vector.multi_reduction <add>, %43, %cst_17 [1, 2] : vector<1x8x8xf32> to vector<1xf32>
    %45 = vector.shape_cast %44 : vector<1xf32> to vector<1x1x1xf32>
    %46 = vector.extract %45[0, 0, 0] : f32 from vector<1x1x1xf32>
    %47 = vector.shape_cast %40 : vector<8x8xf32> to vector<1x8x8xf32>
    %cst_18 = arith.constant dense<0.000000e+00> : vector<1xf32>
    %48 = vector.multi_reduction <add>, %47, %cst_18 [1, 2] : vector<1x8x8xf32> to vector<1xf32>
    %49 = vector.shape_cast %48 : vector<1xf32> to vector<1x1x1xf32>
    %50 = vector.extract %49[0, 0, 0] : f32 from vector<1x1x1xf32>
    %c0_19 = arith.constant 0 : index
    %c0_20 = arith.constant 0 : index
    %51 = memref.load %arg7[%c0_19, %c0_20] : memref<1x2xf32, #tpu.memory_space<smem>>
    memref.store %46, %arg7[%c0_19, %c0_20] : memref<1x2xf32, #tpu.memory_space<smem>>
    %52 = arith.subf %50, %46 : f32
    %c0_21 = arith.constant 0 : index
    %c1 = arith.constant 1 : index
    %53 = memref.load %arg7[%c0_21, %c1] : memref<1x2xf32, #tpu.memory_space<smem>>
    memref.store %52, %arg7[%c0_21, %c1] : memref<1x2xf32, #tpu.memory_space<smem>>
    return
  }
  func.func @transform_0(%arg0: i32, %arg1: memref<1xi32, #tpu.memory_space<smem>>, %arg2: memref<1xi32, #tpu.memory_space<smem>>) -> (i32, i32) {
    %0 = arith.index_cast %arg0 : i32 to index
    %1 = memref.load %arg1[%0] : memref<1xi32, #tpu.memory_space<smem>>
    %c0_i32 = arith.constant 0 : i32
    %c0_i32_0 = arith.constant 0 : i32
    return %1, %c0_i32 : i32, i32
  }
  func.func @transform_1(%arg0: i32, %arg1: memref<1xi32, #tpu.memory_space<smem>>, %arg2: memref<1xi32, #tpu.memory_space<smem>>) -> (i32, i32) {
    %0 = arith.index_cast %arg0 : i32 to index
    %1 = memref.load %arg2[%0] : memref<1xi32, #tpu.memory_space<smem>>
    %c0_i32 = arith.constant 0 : i32
    %c0_i32_0 = arith.constant 0 : i32
    return %1, %c0_i32 : i32, i32
  }
  func.func @transform_2(%arg0: i32, %arg1: memref<1xi32, #tpu.memory_space<smem>>, %arg2: memref<1xi32, #tpu.memory_space<smem>>) -> (i32, i32) {
    %0 = arith.index_cast %arg0 : i32 to index
    %1 = memref.load %arg1[%0] : memref<1xi32, #tpu.memory_space<smem>>
    %c0_i32 = arith.constant 0 : i32
    %c0_i32_0 = arith.constant 0 : i32
    return %1, %c0_i32 : i32, i32
  }
  func.func @transform_3(%arg0: i32, %arg1: memref<1xi32, #tpu.memory_space<smem>>, %arg2: memref<1xi32, #tpu.memory_space<smem>>) -> (i32, i32) {
    %0 = arith.index_cast %arg0 : i32 to index
    %1 = memref.load %arg2[%0] : memref<1xi32, #tpu.memory_space<smem>>
    %c0_i32 = arith.constant 0 : i32
    %c0_i32_0 = arith.constant 0 : i32
    return %c0_i32, %1 : i32, i32
  }
  func.func @transform_4(%arg0: i32, %arg1: memref<1xi32, #tpu.memory_space<smem>>, %arg2: memref<1xi32, #tpu.memory_space<smem>>) -> (i32, i32) {
    %c0_i32 = arith.constant 0 : i32
    %c0_i32_0 = arith.constant 0 : i32
    return %arg0, %c0_i32 : i32, i32
  }
}

</mosaic_0001>

<llo_original>
// kernel: tpu_custom_call.1
$region0: #{tpu_custom_call.1}
  #allocation0 [shape = 'u32[]', space=smem, size = 0x4, offset = 0x4, fixed_abs, tag = 'smem constant byte address 0x4 - core index']
  #allocation1 [shape = 'u32[144,128]{1,0:T(1,128)}', space=vmem, size = 0x12000, scoped, tag = 'internal scratch']
  #allocation2 [shape = 's32[1]{0}', space=sflag, size = 0x4, scoped, tag = 'scoped memory for tpu_custom_call.1']
  #allocation3 [shape = 's32[1]{0:T(128)S(6)}', space=smem, size = 0x200, scoped, tag = 'prefetched SMEM operand 0']
  #allocation4 [shape = 's32[1]{0:T(128)S(6)}', space=smem, size = 0x200, scoped, tag = 'prefetched SMEM operand 1']
  %s0 = inlined_call_operand.<no memory space> [shape: s32[1], index: 0, kind: input, shape index: {}]
  %s1 = inlined_call_operand.<no memory space> [shape: s32[1], index: 1, kind: input, shape index: {}]
  %s2 = inlined_call_operand.vmem [shape: bf16[8,32], index: 2, kind: input, shape index: {}]
  %s3 = inlined_call_operand.vmem [shape: bf16[8,32], index: 3, kind: input, shape index: {}]
  %s4 = inlined_call_operand.vmem [shape: s32[8,1], index: 4, kind: input, shape index: {}]
  %s5 = inlined_call_operand.vmem [shape: s32[1,8], index: 5, kind: input, shape index: {}]
  %s6 = inlined_call_operand.hbm [shape: f32[1,2], index: 6, kind: output, shape index: {}]
  %s7 = sld [smem:[#allocation0]]
  $region26: #{tpu_custom_call.1} parent=0
    _
  %s9 = ssub.s32 1, %s7
  %s10 = scalar_select 0, %s9, %s7
  %11 = sst [smem:[#allocation3]] %s0
  %12 = sst [smem:[#allocation4]] %s1
  $region1: #{tpu_custom_call.1} parent=0
    #allocation5 [shape = 'u8[512]{0}', space=smem, size = 0x200, scoped, tag = 'output window, operand 0, single buffered']
    #allocation6 [shape = 's32[1]{0}', space=sflag, size = 0x4, scoped, tag = 'scoped memory for tpu_custom_call.1']
    %13 = vsyncpa [#allocation6], 0
    // Predicated region
    $region2: #{tpu_custom_call.1} parent=1 // pred_check
      _
    $region3: #{tpu_custom_call.1} parent=1 // pred_check_branch
      %15 = sbr.rel (0) target = $region5
    $region4: #{tpu_custom_call.1} parent=1 // pred_region
      %s16 = sld [smem:[#allocation3]]
      %p17 = scmp.lt.s32.totalorder %s16, 0
      %s18 = scalar_select %p17, %s16, 0
      %s19 = smul.addr %s18, 4
      %s20 = scalar_lea.vmem %s2, %s19
      %s21 = sld [smem:[#allocation3]]
    $region5: #{tpu_custom_call.1} parent=1 // pred_fallthru
      _
    // Predicated region
    $region6: #{tpu_custom_call.1} parent=1 // pred_check
      _
    $region7: #{tpu_custom_call.1} parent=1 // pred_check_branch
      %23 = sbr.rel (0) target = $region9
    $region8: #{tpu_custom_call.1} parent=1 // pred_region
      %s24 = sld [smem:[#allocation4]]
      %p25 = scmp.lt.s32.totalorder %s24, 0
      %s26 = scalar_select %p25, %s24, 0
      %s27 = smul.addr %s26, 4
      %s28 = scalar_lea.vmem %s3, %s27
      %s29 = sld [smem:[#allocation4]]
    $region9: #{tpu_custom_call.1} parent=1 // pred_fallthru
      _
    // Predicated region
    $region10: #{tpu_custom_call.1} parent=1 // pred_check
      _
    $region11: #{tpu_custom_call.1} parent=1 // pred_check_branch
      %31 = sbr.rel (0) target = $region13
    $region12: #{tpu_custom_call.1} parent=1 // pred_region
      %s32 = sld [smem:[#allocation3]]
      %p33 = scmp.lt.s32.totalorder %s32, 0
      %s34 = scalar_select %p33, %s32, 0
      %s35 = smul.addr %s34, 8
      %s36 = scalar_lea.vmem %s4, %s35
      %s37 = sld [smem:[#allocation3]]
    $region13: #{tpu_custom_call.1} parent=1 // pred_fallthru
      _
    // Predicated region
    $region14: #{tpu_custom_call.1} parent=1 // pred_check
      _
    $region15: #{tpu_custom_call.1} parent=1 // pred_check_branch
      %39 = sbr.rel (0) target = $region17
    $region16: #{tpu_custom_call.1} parent=1 // pred_region
      %s40 = sld [smem:[#allocation4]]
      %p41 = scmp.lt.s32.totalorder %s40, 0
      %s42 = scalar_select %p41, %s40, 0
      %s43 = scalar_lea.vmem %s5, %s42
      %s44 = sld [smem:[#allocation4]]
    $region17: #{tpu_custom_call.1} parent=1 // pred_fallthru
      _
    %s45 = sld [smem:[#allocation3]]
    %p46 = scmp.lt.s32.totalorder %s45, 0
    %s47 = scalar_select %p46, %s45, 0
    %s48 = smul.addr %s47, 4
    %s49 = scalar_lea.vmem %s2, %s48
    %s50 = sld [smem:[#allocation4]]
    %p51 = scmp.lt.s32.totalorder %s50, 0
    %s52 = scalar_select %p51, %s50, 0
    %s53 = smul.addr %s52, 4
    %s54 = scalar_lea.vmem %s3, %s53
    %s55 = sld [smem:[#allocation3]]
    %p56 = scmp.lt.s32.totalorder %s55, 0
    %s57 = scalar_select %p56, %s55, 0
    %s58 = smul.addr %s57, 8
    %s59 = scalar_lea.vmem %s4, %s58
    %s60 = sld [smem:[#allocation4]]
    %p61 = scmp.lt.s32.totalorder %s60, 0
    %s62 = scalar_select %p61, %s60, 0
    %s63 = scalar_lea.vmem %s5, %s62
    %s64 = sld [smem:[#allocation3]]
    %p65 = scmp.lt.s32.totalorder %s64, 0
    %s66 = scalar_select %p65, %s64, 0
    %s67 = smul.addr %s66, 4
    %s68 = scalar_lea.vmem %s2, %s67
    %s69 = sld [smem:[#allocation3]]
    %s70 = sld [smem:[#allocation4]]
    %p71 = scmp.lt.s32.totalorder %s70, 0
    %s72 = scalar_select %p71, %s70, 0
    %s73 = smul.addr %s72, 4
    %s74 = scalar_lea.vmem %s3, %s73
    %s75 = sld [smem:[#allocation4]]
    %s76 = sld [smem:[#allocation3]]
    %p77 = scmp.lt.s32.totalorder %s76, 0
    %s78 = scalar_select %p77, %s76, 0
    %s79 = smul.addr %s78, 8
    %s80 = scalar_lea.vmem %s4, %s79
    %s81 = sld [smem:[#allocation3]]
    %s82 = sld [smem:[#allocation4]]
    %p83 = scmp.lt.s32.totalorder %s82, 0
    %s84 = scalar_select %p83, %s82, 0
    %s85 = scalar_lea.vmem %s5, %s84
    %s86 = sld [smem:[#allocation4]]
    %s88 = sld [smem:[#allocation3]]
    %s89 = sld [smem:[#allocation4]]
    %v90 = vld [vmem:[%s68] sm:$0xf]
    %v91 = vld [vmem:[%s74] sm:$0xf]
    %vm92 = vcmask 261120
    %v94 = vsel %vm92, %v90, 0
    %v97 = vsel %vm92, %v91, 0
    %99 = vmatprep.subr.bf16.mxu0 0
    %100 = vmatpush1.bf16.xpose.msra.mxu0 %v97
    %101 = vmatprep.subr.bf16.mxu0 0
    %102 = vmatpush1.bf16.xpose.msra.mxu0 0
    %103 = vmatprep.subr.bf16.mxu0 0
    %104 = vmatpush1.bf16.xpose.msra.mxu0 0
    %105 = vmatprep.subr.bf16.mxu0 0
    %106 = vmatpush1.bf16.xpose.msra.mxu0 0
    %107 = vmatprep.subr.bf16.mxu0 0
    %108 = vmatpush1.bf16.xpose.msra.mxu0 0
    %109 = vmatprep.subr.bf16.mxu0 0
    %110 = vmatpush1.bf16.xpose.msra.mxu0 0
    %111 = vmatprep.subr.bf16.mxu0 0
    %112 = vmatpush1.bf16.xpose.msra.mxu0 0
    %113 = vmatprep.subr.bf16.mxu0 0
    %114 = vmatpush1.bf16.xpose.msra.mxu0 0
    %115 = vmatprep.subr.bf16.mxu0 0
    %116 = vmatpush1.bf16.xpose.msra.mxu0 0
    %117 = vmatprep.subr.bf16.mxu0 0
    %118 = vmatpush1.bf16.xpose.msra.mxu0 0
    %119 = vmatprep.subr.bf16.mxu0 0
    %120 = vmatpush1.bf16.xpose.msra.mxu0 0
    %121 = vmatprep.subr.bf16.mxu0 0
    %122 = vmatpush1.bf16.xpose.msra.mxu0 0
    %123 = vmatprep.subr.bf16.mxu0 0
    %124 = vmatpush1.bf16.xpose.msra.mxu0 0
    %125 = vmatprep.subr.bf16.mxu0 0
    %126 = vmatpush1.bf16.xpose.msra.mxu0 0
    %127 = vmatprep.subr.bf16.mxu0 0
    %128 = vmatpush1.bf16.xpose.msra.mxu0 0
    %129 = vmatprep.subr.bf16.mxu0 0
    %130 = vmatpush1.bf16.xpose.msra.mxu0 0
    %131 = vmatprep.mubr.bf16.mxu0 0
    %132 = vmatmul.mubr.bf16.gmra.mrb[0].mxu0 %v94
    %v133 = vpop.f32.mrb[0].mxu0
    %v134 = vadd.f32 0.0, %v133
    %v135 = vpop.f32.mrb[0].mxu0
    %v136 = vpop.f32.mrb[0].mxu0
    %v137 = vpop.f32.mrb[0].mxu0
    %138 = vdwg.mxu0
    %v139 = vld [vmem:[%s80] sm:$0xff]
    %v140 = vld [vmem:[%s85] sm:$0x1]
    %141 = vset.pattern.permute.xlu0 0
    %142 = vperm.xlu0 %141, %v139
    %v143 = vpop.permute.xlu0 %142
    %v144 = vlaneseq
    %v145 = vshrl.u32 %v144, 7
    %v146 = vsub.s32 0, %v145
    %v147 = vrot.slane %v140, %v146
    %vm148 = vcmp.eq.s32.totalorder %v143, %v147
    %v149 = vsub.f32 1.25, %v134
    %v150 = vmax.f32 %v149, 0.0
    %v151 = vadd.f32 %v134, 0.25
    %v152 = vmax.f32 %v151, 0.0
    %v153 = vsub.f32 0.0, %v150
    %v154 = vsub.f32 %v134, 0.75
    %v155 = vmul.f32 %v153, %v154
    %v156 = vsub.f32 %v134, 0.25
    %v157 = vmul.f32 %v152, %v156
    %v158 = vsel %vm148, %v155, %v157
    %v159 = vmul.f32 %v158, 1.442695
    %v160 = vpow.pop %v159
    %s161 = smul.u32 %s88, 8
    %v162 = vlaneseq
    %v163 = vshrl.u32 %v162, 7
    %v164 = vstv %s161
    %v165 = vadd.s32 %v164, %v163
    %s166 = smul.u32 %s89, 8
    %v167 = vlaneseq
    %v168 = vand.u32 %v167, 127
    %v169 = vstv %s166
    %v170 = vadd.s32 %v169, %v168
    %vm171 = vcmp.gt.s32.totalorder %v170, %v165
    %v172 = vsel %vm171, %v160, 0.0
    %v173 = vsel %vm148, %v172, 0.0
    %vm174 = vcmask 64512
    %v175 = vsel %vm174, %v173, 0.0
    %176 = vadd.xlane.f32.xlu0 %v175
    %v177 = vpop.xlane.xlu0 %176
    %v178 = vrot.slane %v177, 4
    %v179 = vadd.f32 %v177, %v178
    %v180 = vrot.slane %v179, 2
    %v181 = vadd.f32 %v179, %v180
    %v182 = vrot.slane %v181, 1
    %v183 = vadd.f32 %v181, %v182
    %s184 = vtos %v183
    %v185 = vsel %vm174, %v172, 0.0
    %186 = vadd.xlane.f32.xlu0 %v185
    %v187 = vpop.xlane.xlu0 %186
    %v188 = vrot.slane %v187, 4
    %v189 = vadd.f32 %v187, %v188
    %v190 = vrot.slane %v189, 2
    %v191 = vadd.f32 %v189, %v190
    %v192 = vrot.slane %v191, 1
    %v193 = vadd.f32 %v191, %v192
    %s194 = vtos %v193
    %s195 = scalar_lea.smem [#allocation5], 0
    %196 = sst [smem:[%s195]] %s184
    %s197 = ssub.f32 %s194, %s184
    %s198 = scalar_lea.smem [#allocation5], 1
    %199 = sst [smem:[%s198]] %s197
    // Predicated region
    $region18: #{tpu_custom_call.1} parent=1 // pred_check
      _
    $region19: #{tpu_custom_call.1} parent=1 // pred_check_branch
      %201 = sbr.rel (0) target = $region21
    $region20: #{tpu_custom_call.1} parent=1 // pred_region
      %s203 = ssub.s32 16, 16
      %204 = vsyncadd [#allocation6], %s203
      %207 = dma.smem_to_hbm [#allocation5], 16, %s6, [#allocation6]
    $region21: #{tpu_custom_call.1} parent=1 // pred_fallthru
      _
    // Predicated region
    $region22: #{tpu_custom_call.1} parent=1 // pred_check
      _
    $region23: #{tpu_custom_call.1} parent=1 // pred_check_branch
      %209 = sbr.rel (0) target = $region25
    $region24: #{tpu_custom_call.1} parent=1 // pred_region
      %210 = dma.done [#allocation6], 16
    $region25: #{tpu_custom_call.1} parent=1 // pred_fallthru
      _
    %211 = sfence
    %212 = vsyncpa [#allocation6], 1

</llo_original>
